<compile_context>
chip_gen: v7x
topology: tpu7x:2x2x1
jax: 0.10.0
libtpu: 0.0.40
codegen_flags: <defaults>
</compile_context>

<pallas_src>
import functools

import jax
import jax.numpy as jnp
import numpy as np
from jax.experimental import pallas as pl
from jax.experimental.pallas import tpu as pltpu


def _focal_weight(pt, gamma):
    """(1 - pt) ** gamma with integer gammas as repeated VPU multiplies."""
    omp = 1.0 - pt
    g = float(gamma)
    if g == 0.0:
        return jnp.ones_like(pt)
    if g.is_integer() and 0.0 < g <= 8.0:
        w = omp
        for _ in range(int(g) - 1):
            w = w * omp
        return w
    return omp ** g


# --------------------------------------------------------------------------
# 4-D (NCHW) path: classes on a leading non-minor axis, samples dense on
# sublanes x lanes.
# --------------------------------------------------------------------------
def _focal_dense_kernel(x_ref, t_ref, a_ref, out_ref, *, gamma):
    j = pl.program_id(2)

    @pl.when(j == 0)
    def _init():
        out_ref[...] = jnp.zeros_like(out_ref)

    x = x_ref[0].astype(jnp.float32)       # (C, S, 128) class-major, dense samples
    t = t_ref[0, 0]                        # (S, 128) int32 (padded samples are -1)
    a = a_ref[...]                         # (C, 128) lane-broadcast alpha table
    c = x.shape[0]

    # max over the class axis: elementwise maxes across C dense (S, 128) slabs.
    m = x[0]
    for ci in range(1, c):
        m = jnp.maximum(m, x[ci])

    # One fused pass over classes: softmax denominator + one-hot gathers of
    # z[target] and alpha[target].  Padded samples (target == -1) match no
    # class -> a_sel == 0 -> loss == 0, so no per-tile tail mask is needed and
    # the padded logits (zeros) never create inf/NaN.
    s = jnp.zeros_like(m)
    z_sel = jnp.zeros_like(m)
    a_sel = jnp.zeros_like(m)
    for ci in range(c):
        z_ci = x[ci] - m
        s = s + jnp.exp(z_ci)
        msk = t == ci
        z_sel = jnp.where(msk, z_ci, z_sel)
        a_sel = jnp.where(msk, a[ci:ci + 1, :], a_sel)

    logpt = z_sel - jnp.log(s)             # (S, 128)
    pt = jnp.exp(logpt)                    # EUP slot (idle) replaces e_sel / s
    w = _focal_weight(pt, gamma)
    loss = -w * (logpt * a_sel)            # (S, 128); exactly 0 on padded samples

    # Keep the partial sum sublane/lane resident; the single scalar collapse
    # happens once in the wrapper, outside the hot loop.
    out_ref[0, 0] += loss


def _alpha_vec(alpha, num_classes):
    if alpha is None:
        return jnp.ones((num_classes,), jnp.float32)
    if isinstance(alpha, (float, int)):
        vec = jnp.asarray([float(alpha), 1.0 - float(alpha)], jnp.float32)
    else:
        vec = jnp.asarray(alpha, jnp.float32).reshape(-1)
    if int(vec.shape[0]) < num_classes:
        # PyTorch's alpha.gather(0, target) would index out of bounds for any
        # target >= len(alpha); on TPU that would be a silent OOB read, so we
        # validate eagerly instead.
        raise ValueError(
            f"alpha has {int(vec.shape[0])} entries but the input has "
            f"{num_classes} classes")
    return vec[:num_classes]


def _focal_loss_nchw(logits, target, alpha, gamma, size_average):
    n, c = logits.shape[0], logits.shape[1]
    hw = int(np.prod(logits.shape[2:]))
    x = logits.reshape(n, c, hw)                       # spatial stays minor: free view
    t = target.reshape(n, hw).astype(jnp.int32)
    alpha_tab = jnp.broadcast_to(_alpha_vec(alpha, c)[:, None], (c, 128))

    itemsize = int(x.dtype.itemsize)                   # bf16 stays bf16 in HBM;
                                                       # cast to f32 inside the kernel
    budget = 6 * 1024 * 1024                           # double-buffered logits tiles;
                                                       # total footprint stays under
                                                       # v5e's 16 MiB scoped default
    s_needed = -(-hw // 128)                           # sublane rows of 128 samples
    s_budget = max(8, budget // (2 * c * 128 * itemsize))
    s_tile = max(8, (min(s_budget, s_needed, 2048) // 8) * 8)
    num_tiles = -(-s_needed // s_tile)
    n_super = 2 if num_tiles >= 2 else 1               # 2nd parallel axis: v7x megacore
    num_tiles = -(-num_tiles // n_super) * n_super
    s_tile = max(8, ((-(-s_needed // num_tiles) + 7) // 8) * 8)   # rebalance, min pad
    n_inner = num_tiles // n_super
    s_pad = num_tiles * s_tile
    hw_pad = s_pad * 128

    if hw_pad != hw:
        # Pad once in the wrapper: logits with 0 (finite), targets with the
        # sentinel -1 so padded samples contribute exactly 0 in the kernel.
        x = jnp.pad(x, ((0, 0), (0, 0), (0, hw_pad - hw)))
        t = jnp.pad(t, ((0, 0), (0, hw_pad - hw)), constant_values=-1)
    x = x.reshape(n, c, s_pad, 128)
    t = t.reshape(n, 1, s_pad, 128)

    kernel = functools.partial(_focal_dense_kernel, gamma=float(gamma))
    partials = pl.pallas_call(
        kernel,
        out_shape=jax.ShapeDtypeStruct((n, n_super, s_tile, 128), jnp.float32),
        grid_spec=pltpu.PrefetchScalarGridSpec(
            num_scalar_prefetch=0,
            grid=(n, n_super, n_inner),
            in_specs=[
                pl.BlockSpec((1, c, s_tile, 128),
                             lambda b, g, j, _ni=n_inner: (b, 0, g * _ni + j, 0)),
                pl.BlockSpec((1, 1, s_tile, 128),
                             lambda b, g, j, _ni=n_inner: (b, 0, g * _ni + j, 0)),
                pl.BlockSpec((c, 128), lambda b, g, j: (0, 0)),
            ],
            out_specs=pl.BlockSpec((1, 1, s_tile, 128),
                                   lambda b, g, j: (b, g, 0, 0)),
        ),
        compiler_params=pltpu.CompilerParams(
            dimension_semantics=("parallel", "parallel", "arbitrary")),
    )(x, t, alpha_tab)

    total = jnp.sum(partials)                          # one collapse, outside the kernel
    if size_average:
        total = total / jnp.float32(n * hw)
    return total


# --------------------------------------------------------------------------
# 2-D (M, C) path: rows on sublanes, classes on lanes (no wrapper transpose).
# --------------------------------------------------------------------------
def _focal_rows_kernel(x_ref, t_ref, a_ref, out_ref, *, gamma):
    i = pl.program_id(0)

    @pl.when(i == 0)
    def _init():
        out_ref[...] = jnp.zeros_like(out_ref)

    x = x_ref[...].astype(jnp.float32)     # (TM, C) classes on lanes
    t = t_ref[...]                         # (TM, 1) int32 (padded rows are -1)

    m = jnp.max(x, axis=-1, keepdims=True)
    z = x - m
    s = jnp.sum(jnp.exp(z), axis=-1, keepdims=True)

    lane = jax.lax.broadcasted_iota(jnp.int32, x.shape, 1)
    onehot = lane == t
    z_sel = jnp.sum(jnp.where(onehot, z, 0.0), axis=-1, keepdims=True)
    a_sel = jnp.sum(jnp.where(onehot, a_ref[...], 0.0), axis=-1, keepdims=True)

    logpt = z_sel - jnp.log(s)
    pt = jnp.exp(logpt)
    w = _focal_weight(pt, gamma)
    loss = -w * (logpt * a_sel)            # (TM, 1); 0 on padded rows

    out_ref[...] += jnp.sum(loss)


def _focal_loss_rows(logits, target, alpha, gamma, size_average):
    mrows, c = logits.shape
    alpha_row = _alpha_vec(alpha, c)[None, :]          # (1, C)

    tile_m = min(1024, max(8, (-(-mrows // 8)) * 8))
    m_pad = -(-mrows // tile_m) * tile_m
    x = logits
    t = target.reshape(mrows, 1).astype(jnp.int32)
    if m_pad != mrows:
        x = jnp.pad(x, ((0, m_pad - mrows), (0, 0)))
        t = jnp.pad(t, ((0, m_pad - mrows), (0, 0)), constant_values=-1)
    num_tiles = m_pad // tile_m

    kernel = functools.partial(_focal_rows_kernel, gamma=float(gamma))
    partials = pl.pallas_call(
        kernel,
        out_shape=jax.ShapeDtypeStruct((8, 128), jnp.float32),
        grid_spec=pltpu.PrefetchScalarGridSpec(
            num_scalar_prefetch=0,
            grid=(num_tiles,),
            in_specs=[
                pl.BlockSpec((tile_m, c), lambda i: (i, 0)),
                pl.BlockSpec((tile_m, 1), lambda i: (i, 0)),
                pl.BlockSpec((1, c), lambda i: (0, 0)),
            ],
            out_specs=pl.BlockSpec((8, 128), lambda i: (0, 0)),
        ),
        compiler_params=pltpu.CompilerParams(
            dimension_semantics=("arbitrary",)),
    )(x, t, alpha_row)

    total = partials[0, 0]
    if size_average:
        total = total / jnp.float32(mrows)
    return total


def focal_loss(logits, target, alpha=None, gamma=0.0, size_average=True):
    """Pallas FocalLoss forward, mirroring the PyTorch module semantics."""
    if logits.ndim > 2:
        return _focal_loss_nchw(logits, target, alpha, gamma, size_average)
    return _focal_loss_rows(logits, target, alpha, gamma, size_average)


# --------------------------------------------------------------------------
# Pure-JAX reference (mirrors the PyTorch module) and self-test.
# --------------------------------------------------------------------------
def _focal_loss_ref(logits, target, alpha, gamma=0.0, size_average=True):
    if logits.ndim > 2:
        n, c = logits.shape[0], logits.shape[1]
        x = logits.reshape(n, c, -1)
        x = jnp.transpose(x, (0, 2, 1)).reshape(-1, c)
    else:
        x = logits
        c = x.shape[1]
    t = target.reshape(-1).astype(jnp.int32)
    logp = jax.nn.log_softmax(x.astype(jnp.float32), axis=-1)
    logpt = jnp.take_along_axis(logp, t[:, None], axis=1)[:, 0]
    pt = jnp.exp(logpt)
    if alpha is None:
        at = jnp.ones((c,), jnp.float32)[t]
    elif isinstance(alpha, (float, int)):
        at = jnp.asarray([float(alpha), 1.0 - float(alpha)], jnp.float32)[t]
    else:
        at = jnp.asarray(alpha, jnp.float32)[t]
    logpt = logpt * at
    loss = -((1.0 - pt) ** float(gamma)) * logpt
    return jnp.mean(loss) if size_average else jnp.sum(loss)


if __name__ == "__main__":
    key = jax.random.PRNGKey(0)
    k1, k2, k3, k4, k5, k6 = jax.random.split(key, 6)

    N, C, H, W = 2, 4, 16, 16
    gamma = 2.0
    alpha = [0.1, 0.2, 0.3, 0.4]          # per-class alpha weights (length C)

    logits = jax.random.normal(k1, (N, C, H, W), dtype=jnp.float32)
    target = jax.random.randint(k2, (N, H, W), 0, C, dtype=jnp.int32)

    # mean reduction
    loss = jax.block_until_ready(
        focal_loss(logits, target, alpha, gamma=gamma, size_average=True))
    ref = _focal_loss_ref(logits, target, alpha, gamma=gamma, size_average=True)
    np.testing.assert_allclose(np.asarray(loss), np.asarray(ref),
                               rtol=2e-5, atol=1e-6)

    # sum reduction
    loss_sum = jax.block_until_ready(
        focal_loss(logits, target, alpha, gamma=gamma, size_average=False))
    ref_sum = _focal_loss_ref(logits, target, alpha, gamma=gamma, size_average=False)
    np.testing.assert_allclose(np.asarray(loss_sum), np.asarray(ref_sum),
                               rtol=2e-5, atol=1e-5)

    # non-multiple-of-128 spatial extent exercises the pad / sentinel-target path
    H2, W2 = 5, 51                        # HW = 255
    logits2 = jax.random.normal(k3, (N, C, H2, W2), dtype=jnp.float32)
    target2 = jax.random.randint(k4, (N, H2, W2), 0, C, dtype=jnp.int32)
    loss2 = jax.block_until_ready(
        focal_loss(logits2, target2, alpha, gamma=gamma, size_average=True))
    ref2 = _focal_loss_ref(logits2, target2, alpha, gamma=gamma, size_average=True)
    np.testing.assert_allclose(np.asarray(loss2), np.asarray(ref2),
                               rtol=2e-5, atol=1e-6)

    # 2-D (M, C) path: classes on lanes, no wrapper-side transpose pass
    M2D = 10
    logits3 = jax.random.normal(k5, (M2D, C), dtype=jnp.float32)
    target3 = jax.random.randint(k6, (M2D,), 0, C, dtype=jnp.int32)
    loss3 = jax.block_until_ready(
        focal_loss(logits3, target3, alpha, gamma=gamma, size_average=True))
    ref3 = _focal_loss_ref(logits3, target3, alpha, gamma=gamma, size_average=True)
    np.testing.assert_allclose(np.asarray(loss3), np.asarray(ref3),
                               rtol=2e-5, atol=1e-6)

    print("KERNEL_OK")
</pallas_src>

<mosaic_0001>
module attributes {stable_mosaic.version = 11 : i64} {
  func.func @_focal_dense_kernel(%arg0: i32, %arg1: i32, %arg2: i32, %arg3: memref<1x4x8x128xf32, #tpu.memory_space<vmem>>, %arg4: memref<1x1x8x128xi32, #tpu.memory_space<vmem>>, %arg5: memref<4x128xf32, #tpu.memory_space<vmem>>, %arg6: memref<1x1x8x128xf32, #tpu.memory_space<vmem>>) attributes {dimension_semantics = [#tpu.dimension_semantics<parallel>, #tpu.dimension_semantics<parallel>, #tpu.dimension_semantics<arbitrary>], iteration_bounds = array<i64: 2, 1, 1>, scalar_prefetch = 0 : i64, scratch_operands = 0 : i64, tpu.core_type = #tpu.core_type<tc>, window_params = [{transform_indices = @transform_0, window_bounds = array<i64: 1, 4, 8, 128>}, {transform_indices = @transform_1, window_bounds = array<i64: 1, 1, 8, 128>}, {pipeline_mode = #tpu.pipeline_mode<synchronous>, transform_indices = @transform_2, window_bounds = array<i64: 4, 128>}, {transform_indices = @transform_3, window_bounds = array<i64: 1, 1, 8, 128>}]} {
    %c0_i32 = arith.constant 0 : i32
    %0 = arith.cmpi eq, %arg2, %c0_i32 : i32
    %1 = arith.extui %0 : i1 to i32
    %c0_i32_0 = arith.constant 0 : i32
    %2 = arith.cmpi ne, %1, %c0_i32_0 : i32
    scf.if %2 {
      %cst_23 = arith.constant 0.000000e+00 : f32
      %86 = vector.broadcast %cst_23 : f32 to vector<1x1x8x128xf32>
      %c0_24 = arith.constant 0 : index
      %c0_25 = arith.constant 0 : index
      %c0_26 = arith.constant 0 : index
      %c0_27 = arith.constant 0 : index
      %87 = vector.load %arg6[%c0_24, %c0_25, %c0_26, %c0_27] : memref<1x1x8x128xf32, #tpu.memory_space<vmem>>, vector<1x1x8x128xf32>
      tpu.vector_store %arg6[%c0_24, %c0_25, %c0_26, %c0_27], %86 {strides = array<i32>} : memref<1x1x8x128xf32, #tpu.memory_space<vmem>>, vector<1x1x8x128xf32>,
    } else {
    }
    %c0 = arith.constant 0 : index
    %c0_1 = arith.constant 0 : index
    %c0_2 = arith.constant 0 : index
    %c0_3 = arith.constant 0 : index
    %3 = vector.load %arg3[%c0, %c0_1, %c0_2, %c0_3] : memref<1x4x8x128xf32, #tpu.memory_space<vmem>>, vector<1x4x8x128xf32>
    %4 = vector.shape_cast %3 : vector<1x4x8x128xf32> to vector<4x8x128xf32>
    %c0_4 = arith.constant 0 : index
    %c0_5 = arith.constant 0 : index
    %c0_6 = arith.constant 0 : index
    %c0_7 = arith.constant 0 : index
    %5 = vector.load %arg4[%c0_4, %c0_5, %c0_6, %c0_7] : memref<1x1x8x128xi32, #tpu.memory_space<vmem>>, vector<1x1x8x128xi32>
    %6 = vector.shape_cast %5 : vector<1x1x8x128xi32> to vector<8x128xi32>
    %c0_8 = arith.constant 0 : index
    %c0_9 = arith.constant 0 : index
    %7 = vector.load %arg5[%c0_8, %c0_9] : memref<4x128xf32, #tpu.memory_space<vmem>>, vector<4x128xf32>
    %8 = vector.extract_strided_slice %4 {offsets = [0, 0, 0], sizes = [1, 8, 128], strides = [1, 1, 1]} : vector<4x8x128xf32> to vector<1x8x128xf32>
    %9 = vector.shape_cast %8 : vector<1x8x128xf32> to vector<8x128xf32>
    %10 = vector.extract_strided_slice %4 {offsets = [1, 0, 0], sizes = [1, 8, 128], strides = [1, 1, 1]} : vector<4x8x128xf32> to vector<1x8x128xf32>
    %11 = vector.shape_cast %10 : vector<1x8x128xf32> to vector<8x128xf32>
    %12 = arith.maximumf %9, %11 : vector<8x128xf32>
    %13 = vector.extract_strided_slice %4 {offsets = [2, 0, 0], sizes = [1, 8, 128], strides = [1, 1, 1]} : vector<4x8x128xf32> to vector<1x8x128xf32>
    %14 = vector.shape_cast %13 : vector<1x8x128xf32> to vector<8x128xf32>
    %15 = arith.maximumf %12, %14 : vector<8x128xf32>
    %16 = vector.extract_strided_slice %4 {offsets = [3, 0, 0], sizes = [1, 8, 128], strides = [1, 1, 1]} : vector<4x8x128xf32> to vector<1x8x128xf32>
    %17 = vector.shape_cast %16 : vector<1x8x128xf32> to vector<8x128xf32>
    %18 = arith.maximumf %15, %17 : vector<8x128xf32>
    %cst = arith.constant 0.000000e+00 : f32
    %19 = vector.broadcast %cst : f32 to vector<8x128xf32>
    %cst_10 = arith.constant 0.000000e+00 : f32
    %20 = vector.broadcast %cst_10 : f32 to vector<8x128xf32>
    %cst_11 = arith.constant 0.000000e+00 : f32
    %21 = vector.broadcast %cst_11 : f32 to vector<8x128xf32>
    %22 = vector.extract_strided_slice %4 {offsets = [0, 0, 0], sizes = [1, 8, 128], strides = [1, 1, 1]} : vector<4x8x128xf32> to vector<1x8x128xf32>
    %23 = vector.shape_cast %22 : vector<1x8x128xf32> to vector<8x128xf32>
    %24 = arith.subf %23, %18 : vector<8x128xf32>
    %25 = math.exp %24 : vector<8x128xf32>
    %26 = arith.addf %19, %25 : vector<8x128xf32>
    %c0_i32_12 = arith.constant 0 : i32
    %27 = vector.broadcast %c0_i32_12 : i32 to vector<8x128xi32>
    %28 = arith.cmpi eq, %6, %27 : vector<8x128xi32>
    %29 = arith.select %28, %24, %20 : vector<8x128xi1>, vector<8x128xf32>
    %30 = vector.extract_strided_slice %7 {offsets = [0, 0], sizes = [1, 128], strides = [1, 1]} : vector<4x128xf32> to vector<1x128xf32>
    %31 = vector.shape_cast %30 : vector<1x128xf32> to vector<1x128xf32>
    %32 = vector.broadcast %31 : vector<1x128xf32> to vector<8x128xf32>
    %33 = arith.select %28, %32, %21 : vector<8x128xi1>, vector<8x128xf32>
    %34 = vector.extract_strided_slice %4 {offsets = [1, 0, 0], sizes = [1, 8, 128], strides = [1, 1, 1]} : vector<4x8x128xf32> to vector<1x8x128xf32>
    %35 = vector.shape_cast %34 : vector<1x8x128xf32> to vector<8x128xf32>
    %36 = arith.subf %35, %18 : vector<8x128xf32>
    %37 = math.exp %36 : vector<8x128xf32>
    %38 = arith.addf %26, %37 : vector<8x128xf32>
    %c1_i32 = arith.constant 1 : i32
    %39 = vector.broadcast %c1_i32 : i32 to vector<8x128xi32>
    %40 = arith.cmpi eq, %6, %39 : vector<8x128xi32>
    %41 = arith.select %40, %36, %29 : vector<8x128xi1>, vector<8x128xf32>
    %42 = vector.extract_strided_slice %7 {offsets = [1, 0], sizes = [1, 128], strides = [1, 1]} : vector<4x128xf32> to vector<1x128xf32>
    %43 = vector.shape_cast %42 : vector<1x128xf32> to vector<1x128xf32>
    %44 = vector.broadcast %43 : vector<1x128xf32> to vector<8x128xf32>
    %45 = arith.select %40, %44, %33 : vector<8x128xi1>, vector<8x128xf32>
    %46 = vector.extract_strided_slice %4 {offsets = [2, 0, 0], sizes = [1, 8, 128], strides = [1, 1, 1]} : vector<4x8x128xf32> to vector<1x8x128xf32>
    %47 = vector.shape_cast %46 : vector<1x8x128xf32> to vector<8x128xf32>
    %48 = arith.subf %47, %18 : vector<8x128xf32>
    %49 = math.exp %48 : vector<8x128xf32>
    %50 = arith.addf %38, %49 : vector<8x128xf32>
    %c2_i32 = arith.constant 2 : i32
    %51 = vector.broadcast %c2_i32 : i32 to vector<8x128xi32>
    %52 = arith.cmpi eq, %6, %51 : vector<8x128xi32>
    %53 = arith.select %52, %48, %41 : vector<8x128xi1>, vector<8x128xf32>
    %54 = vector.extract_strided_slice %7 {offsets = [2, 0], sizes = [1, 128], strides = [1, 1]} : vector<4x128xf32> to vector<1x128xf32>
    %55 = vector.shape_cast %54 : vector<1x128xf32> to vector<1x128xf32>
    %56 = vector.broadcast %55 : vector<1x128xf32> to vector<8x128xf32>
    %57 = arith.select %52, %56, %45 : vector<8x128xi1>, vector<8x128xf32>
    %58 = vector.extract_strided_slice %4 {offsets = [3, 0, 0], sizes = [1, 8, 128], strides = [1, 1, 1]} : vector<4x8x128xf32> to vector<1x8x128xf32>
    %59 = vector.shape_cast %58 : vector<1x8x128xf32> to vector<8x128xf32>
    %60 = arith.subf %59, %18 : vector<8x128xf32>
    %61 = math.exp %60 : vector<8x128xf32>
    %62 = arith.addf %50, %61 : vector<8x128xf32>
    %c3_i32 = arith.constant 3 : i32
    %63 = vector.broadcast %c3_i32 : i32 to vector<8x128xi32>
    %64 = arith.cmpi eq, %6, %63 : vector<8x128xi32>
    %65 = arith.select %64, %60, %53 : vector<8x128xi1>, vector<8x128xf32>
    %66 = vector.extract_strided_slice %7 {offsets = [3, 0], sizes = [1, 128], strides = [1, 1]} : vector<4x128xf32> to vector<1x128xf32>
    %67 = vector.shape_cast %66 : vector<1x128xf32> to vector<1x128xf32>
    %68 = vector.broadcast %67 : vector<1x128xf32> to vector<8x128xf32>
    %69 = arith.select %64, %68, %57 : vector<8x128xi1>, vector<8x128xf32>
    %70 = math.log %62 : vector<8x128xf32>
    %71 = arith.subf %65, %70 : vector<8x128xf32>
    %72 = math.exp %71 : vector<8x128xf32>
    %cst_13 = arith.constant 1.000000e+00 : f32
    %73 = vector.broadcast %cst_13 : f32 to vector<8x128xf32>
    %74 = arith.subf %73, %72 : vector<8x128xf32>
    %75 = arith.mulf %74, %74 : vector<8x128xf32>
    %cst_14 = arith.constant 0.000000e+00 : f32
    %76 = vector.broadcast %cst_14 : f32 to vector<8x128xf32>
    %77 = arith.subf %76, %75 : vector<8x128xf32>
    %78 = arith.mulf %71, %69 : vector<8x128xf32>
    %79 = arith.mulf %77, %78 : vector<8x128xf32>
    %c0_15 = arith.constant 0 : index
    %c0_16 = arith.constant 0 : index
    %c0_17 = arith.constant 0 : index
    %c0_18 = arith.constant 0 : index
    %80 = vector.load %arg6[%c0_15, %c0_16, %c0_17, %c0_18] : memref<1x1x8x128xf32, #tpu.memory_space<vmem>>, vector<1x1x8x128xf32>
    %81 = vector.shape_cast %80 : vector<1x1x8x128xf32> to vector<8x128xf32>
    %82 = arith.addf %81, %79 : vector<8x128xf32>
    %c0_19 = arith.constant 0 : index
    %c0_20 = arith.constant 0 : index
    %c0_21 = arith.constant 0 : index
    %c0_22 = arith.constant 0 : index
    %83 = vector.load %arg6[%c0_19, %c0_20, %c0_21, %c0_22] : memref<1x1x8x128xf32, #tpu.memory_space<vmem>>, vector<1x1x8x128xf32>
    %84 = vector.shape_cast %83 : vector<1x1x8x128xf32> to vector<8x128xf32>
    %85 = vector.shape_cast %82 : vector<8x128xf32> to vector<1x1x8x128xf32>
    tpu.vector_store %arg6[%c0_19, %c0_20, %c0_21, %c0_22], %85 {strides = array<i32>} : memref<1x1x8x128xf32, #tpu.memory_space<vmem>>, vector<1x1x8x128xf32>,
    return
  }
  func.func @transform_0(%arg0: i32, %arg1: i32, %arg2: i32) -> (i32, i32, i32, i32) {
    %c1_i32 = arith.constant 1 : i32
    %0 = arith.muli %arg1, %c1_i32 : i32
    %1 = arith.addi %0, %arg2 : i32
    %c0_i32 = arith.constant 0 : i32
    %c0_i32_0 = arith.constant 0 : i32
    %c0_i32_1 = arith.constant 0 : i32
    return %arg0, %c0_i32, %1, %c0_i32_0 : i32, i32, i32, i32
  }
  func.func @transform_1(%arg0: i32, %arg1: i32, %arg2: i32) -> (i32, i32, i32, i32) {
    %c1_i32 = arith.constant 1 : i32
    %0 = arith.muli %arg1, %c1_i32 : i32
    %1 = arith.addi %0, %arg2 : i32
    %c0_i32 = arith.constant 0 : i32
    %c0_i32_0 = arith.constant 0 : i32
    %c0_i32_1 = arith.constant 0 : i32
    return %arg0, %c0_i32, %1, %c0_i32_0 : i32, i32, i32, i32
  }
  func.func @transform_2(%arg0: i32, %arg1: i32, %arg2: i32) -> (i32, i32) {
    %c0_i32 = arith.constant 0 : i32
    %c0_i32_0 = arith.constant 0 : i32
    %c0_i32_1 = arith.constant 0 : i32
    return %c0_i32, %c0_i32_0 : i32, i32
  }
  func.func @transform_3(%arg0: i32, %arg1: i32, %arg2: i32) -> (i32, i32, i32, i32) {
    %c0_i32 = arith.constant 0 : i32
    %c0_i32_0 = arith.constant 0 : i32
    %c0_i32_1 = arith.constant 0 : i32
    return %arg0, %arg1, %c0_i32, %c0_i32_0 : i32, i32, i32, i32
  }
}

</mosaic_0001>

<llo_original>
// kernel: tpu_custom_call.1
$region0: #{tpu_custom_call.1}
  #allocation0 [shape = 'u32[]', space=smem, size = 0x4, offset = 0x4, fixed_abs, tag = 'smem constant byte address 0x4 - core index']
  #allocation1 [shape = 'u32[144,128]{1,0:T(1,128)}', space=vmem, size = 0x12000, scoped, tag = 'internal scratch']
  %s0 = inlined_call_operand.hbm [shape: f32[2,4,8,128], index: 0, kind: input, shape index: {}]
  %s1 = inlined_call_operand.hbm [shape: s32[2,1,8,128], index: 1, kind: input, shape index: {}]
  %s2 = inlined_call_operand.vmem [shape: f32[4,128], index: 2, kind: input, shape index: {}]
  %s3 = inlined_call_operand.hbm [shape: f32[2,1,8,128], index: 3, kind: output, shape index: {}]
  %s4 = sld [smem:[#allocation0]]
  $region57: #{tpu_custom_call.1} parent=0
    _
  %s6 = ssub.s32 1, %s4
  %s7 = scalar_select 0, %s6, %s4
  $region1: #{tpu_custom_call.1} parent=0
    #allocation2 [shape = 'u8[32768]{0}', space=vmem, size = 0x8000, scoped, tag = 'input window, operand 0']
    #allocation3 [shape = 's32[2]{0}', space=sflag, size = 0x8, scoped, tag = 'scoped memory for tpu_custom_call.1']
    #allocation4 [shape = 's32[2]{0}', space=sflag, size = 0x8, scoped, tag = 'scoped memory for tpu_custom_call.1']
    #allocation5 [shape = 'u8[8192]{0}', space=vmem, size = 0x2000, scoped, tag = 'input window, operand 1']
    #allocation6 [shape = 's32[2]{0}', space=sflag, size = 0x8, scoped, tag = 'scoped memory for tpu_custom_call.1']
    #allocation7 [shape = 'u8[8192]{0}', space=vmem, size = 0x2000, scoped, tag = 'output window, operand 0']
    %8 = vsyncpa [#allocation3], 0
    %s9 = scalar_lea.sflag [#allocation3], 1
    %10 = vsyncpa %s9, 0
    %11 = vsyncpa [#allocation6], 0
    %s12 = scalar_lea.sflag [#allocation6], 1
    %13 = vsyncpa %s12, 0
    %14 = vsyncpa [#allocation4], 0
    %s15 = scalar_lea.sflag [#allocation4], 1
    %16 = vsyncpa %s15, 0
    loop: start=0, step=1, limit=4
    $region2: #{tpu_custom_call.1} parent=1 // loop_pre_header
      _
    $region3: #{tpu_custom_call.1} parent=1 // loop_header
      %s18 = sphi 0, %s22
      %p19 = scmp.ge.s32.totalorder %s18, 4
      %s25 = sphi 0, %s44
      %s26 = sphi 0, %s40
      %s27 = sphi 0, %s36
      %s28 = sphi 0, %s25
      %s29 = sphi 0, %s26
      %s30 = sphi 0, %s27
      %s31 = sphi 0, %s28
      %s32 = sphi 0, %s29
      %s33 = sphi 0, %s30
      %s51 = sphi 0, %s53
      %s54 = sphi 0, %s51
      %s55 = sphi 0, %s54
      %s71 = sphi 0, %s55
      %s81 = sphi 0, %s83
      %s84 = sphi 0, %s81
      %s85 = sphi 0, %s84
      %s101 = sphi 0, %s85
      %s105 = sphi 0, %s105
      %s107 = sphi 0, %s105
      %s108 = sphi 0, %s107
      %s122 = sphi 0, %s108
      %s130 = sphi 0, %s132
      %s133 = sphi 0, %s130
      %s134 = sphi 0, %s133
      %s150 = sphi 0, %s134
    $region4: #{tpu_custom_call.1} parent=1 // loop_header_branch
      %21 = sbr.rel (%p19) target = $region8
    $region5: #{tpu_custom_call.1} parent=1 // loop_body
      %s23 = ssub.s32 %s18, 1
      %s24 = ssub.s32 %s18, 2
      %s34 = sadd.s32 1, %s27
      %p35 = scmp.ge.s32.totalorder %s34, 1
      %s36 = scalar_select %p35, 0, %s34
      %s37 = sadd.s32 1, %s26
      %s38 = scalar_select %p35, %s37, %s26
      %p39 = scmp.ge.s32.totalorder %s38, 1
      %s40 = scalar_select %p39, 0, %s38
      %s41 = sadd.s32 1, %s25
      %s42 = scalar_select %p39, %s41, %s25
      %p43 = scmp.ge.s32.totalorder %s42, 2
      %s44 = scalar_select %p43, 0, %s42
      %s45 = sadd.s32 %s26, %s27
      %s46 = sadd.s32 %s40, %s36
      %s47 = ssub.s32 %s25, %s44
      %s48 = ssub.s32 %s45, %s46
      %s49 = sor.u32 %s47, %s48
      %p50 = scmp.eq.s32.totalorder %s49, 0
      %s52 = sadd.s32 %s51, 1
      %s53 = scalar_select %p50, %s51, %s52
      %p56 = pneg %p50
      %p57 = scmp.eq.s32.totalorder %s18, 1
      %p58 = por %p56, %p57
      %p59 = scmp.ne.s32.totalorder %s51, %s54
      %p60 = scmp.eq.s32.totalorder %s18, 0
      %p61 = por %p59, %p60
      %p62 = scmp.ne.s32.totalorder %s51, %s54
      %p63 = scmp.eq.s32.totalorder %s23, 1
      %p64 = por %p62, %p63
      %p65 = scmp.ne.s32.totalorder %s54, %s55
      %p66 = scmp.eq.s32.totalorder %s23, 0
      %p67 = por %p65, %p66
      %p68 = scmp.ne.s32.totalorder %s54, %s55
      %p69 = scmp.eq.s32.totalorder %s24, 1
      %p70 = por %p68, %p69
      %p72 = scmp.ne.s32.totalorder %s55, %s71
      %p73 = scmp.eq.s32.totalorder %s24, 0
      %p74 = por %p72, %p73
      %s75 = sadd.s32 %s26, %s27
      %s76 = sadd.s32 %s40, %s36
      %s77 = ssub.s32 %s25, %s44
      %s78 = ssub.s32 %s75, %s76
      %s79 = sor.u32 %s77, %s78
      %p80 = scmp.eq.s32.totalorder %s79, 0
      %s82 = sadd.s32 %s81, 1
      %s83 = scalar_select %p80, %s81, %s82
      %p86 = pneg %p80
      %p87 = scmp.eq.s32.totalorder %s18, 1
      %p88 = por %p86, %p87
      %p89 = scmp.ne.s32.totalorder %s81, %s84
      %p90 = scmp.eq.s32.totalorder %s18, 0
      %p91 = por %p89, %p90
      %p92 = scmp.ne.s32.totalorder %s81, %s84
      %p93 = scmp.eq.s32.totalorder %s23, 1
      %p94 = por %p92, %p93
      %p95 = scmp.ne.s32.totalorder %s84, %s85
      %p96 = scmp.eq.s32.totalorder %s23, 0
      %p97 = por %p95, %p96
      %p98 = scmp.ne.s32.totalorder %s84, %s85
      %p99 = scmp.eq.s32.totalorder %s24, 1
      %p100 = por %p98, %p99
      %p102 = scmp.ne.s32.totalorder %s85, %s101
      %p103 = scmp.eq.s32.totalorder %s24, 0
      %p104 = por %p102, %p103
      %s106 = sadd.s32 %s105, 1
      %p109 = scmp.eq.s32.totalorder %s18, 1
      %p110 = scmp.ne.s32.totalorder %s105, %s107
      %p111 = scmp.eq.s32.totalorder %s18, 0
      %p112 = por %p110, %p111
      %p113 = scmp.ne.s32.totalorder %s105, %s107
      %p114 = scmp.eq.s32.totalorder %s23, 1
      %p115 = por %p113, %p114
      %p116 = scmp.ne.s32.totalorder %s107, %s108
      %p117 = scmp.eq.s32.totalorder %s23, 0
      %p118 = por %p116, %p117
      %p119 = scmp.ne.s32.totalorder %s107, %s108
      %p120 = scmp.eq.s32.totalorder %s24, 1
      %p121 = por %p119, %p120
      %p123 = scmp.ne.s32.totalorder %s108, %s122
      %p124 = scmp.eq.s32.totalorder %s24, 0
      %p125 = por %p123, %p124
      %s126 = ssub.s32 %s25, %s44
      %s127 = ssub.s32 %s26, %s40
      %s128 = sor.u32 %s126, %s127
      %p129 = scmp.eq.s32.totalorder %s128, 0
      %s131 = sadd.s32 %s130, 1
      %s132 = scalar_select %p129, %s130, %s131
      %p135 = pneg %p129
      %p136 = scmp.eq.s32.totalorder %s18, 1
      %p137 = por %p135, %p136
      %p138 = scmp.ne.s32.totalorder %s130, %s133
      %p139 = scmp.eq.s32.totalorder %s18, 0
      %p140 = por %p138, %p139
      %p141 = scmp.ne.s32.totalorder %s130, %s133
      %p142 = scmp.eq.s32.totalorder %s23, 1
      %p143 = por %p141, %p142
      %p144 = scmp.ne.s32.totalorder %s133, %s134
      %p145 = scmp.eq.s32.totalorder %s23, 0
      %p146 = por %p144, %p145
      %p147 = scmp.ne.s32.totalorder %s133, %s134
      %p148 = scmp.eq.s32.totalorder %s24, 1
      %p149 = por %p147, %p148
      %p151 = scmp.ne.s32.totalorder %s134, %s150
      %p152 = scmp.eq.s32.totalorder %s24, 0
      %p153 = por %p151, %p152
      %p154 = scmp.le.s32.totalorder 1, %s18
      %p155 = scmp.lt.s32.totalorder %s18, 3
      %p156 = pnand %p154, %p155
      %p157 = pneg %p156
      // Predicated region
      $region9: #{tpu_custom_call.1} parent=5 // pred_check
        _
      $region10: #{tpu_custom_call.1} parent=5 // pred_check_branch
        %159 = sbr.rel (%p156) target = $region12
      $region11: #{tpu_custom_call.1} parent=5 // pred_region
        %s160 = ssub.s32 %s18, 1
        // Predicated region
        $region13: #{tpu_custom_call.1} parent=11 // pred_check
          %p161 = pneg %p118
        $region14: #{tpu_custom_call.1} parent=11 // pred_check_branch
          %163 = sbr.rel (%p161) target = $region16
        $region15: #{tpu_custom_call.1} parent=11 // pred_region
          _
        $region16: #{tpu_custom_call.1} parent=11 // pred_fallthru
          _
      $region12: #{tpu_custom_call.1} parent=5 // pred_fallthru
        _
      %p164 = scmp.lt.s32.totalorder %s18, 2
      // Predicated region
      $region17: #{tpu_custom_call.1} parent=5 // pred_check
        %p165 = pneg %p164
      $region18: #{tpu_custom_call.1} parent=5 // pred_check_branch
        %167 = sbr.rel (%p165) target = $region20
      $region19: #{tpu_custom_call.1} parent=5 // pred_region
        // Predicated region
        $region21: #{tpu_custom_call.1} parent=19 // pred_check
          %p168 = pneg %p61
        $region22: #{tpu_custom_call.1} parent=19 // pred_check_branch
          %170 = sbr.rel (%p168) target = $region24
        $region23: #{tpu_custom_call.1} parent=19 // pred_region
          %s171 = sand.u32 %s51, 1
          %s172 = scalar_lea.sflag [#allocation3], %s171
          %s173 = sand.u32 %s51, 1
          %s174 = smul.addr %s173, 32
          %s175 = scalar_lea.vmem [#allocation2], %s174
          %s176 = sadd.s32 %s26, %s27
          %s178 = ssub.s32 512, 512
          %179 = vsyncadd %s172, %s178
          %s180 = smul.addr %s25, 4
          %s181 = sadd.s32 %s176, %s180
          %s182 = smul.addr %s181, 128
          %s183 = scalar_lea.hbm %s0, %s182
          %s184 = sshll.u32 %s175, 4
          %s185 = int_to_ptr.vmem [resolvable:$true] %s184
          %190 = dma.hbm_to_vmem [thread:$0]  %s183, 512, %s185, %s172, 128, 128, 8
        $region24: #{tpu_custom_call.1} parent=19 // pred_fallthru
          _
        // Predicated region
        $region25: #{tpu_custom_call.1} parent=19 // pred_check
          %p191 = pneg %p91
        $region26: #{tpu_custom_call.1} parent=19 // pred_check_branch
          %193 = sbr.rel (%p191) target = $region28
        $region27: #{tpu_custom_call.1} parent=19 // pred_region
          %s194 = sand.u32 %s81, 1
          %s195 = scalar_lea.sflag [#allocation6], %s194
          %s196 = sand.u32 %s81, 1
          %s197 = smul.addr %s196, 8
          %s198 = scalar_lea.vmem [#allocation5], %s197
          %s199 = sadd.s32 %s26, %s27
          %s201 = ssub.s32 128, 128
          %202 = vsyncadd %s195, %s201
          %s203 = sadd.s32 %s199, %s25
          %s204 = smul.addr %s203, 128
          %s205 = scalar_lea.hbm %s1, %s204
          %s207 = sshll.u32 %s198, 4
          %s208 = int_to_ptr.vmem [resolvable:$true] %s207
          %210 = dma.hbm_to_vmem [thread:$0]  %s205, 128, %s208, %s195
        $region28: #{tpu_custom_call.1} parent=19 // pred_fallthru
          _
      $region20: #{tpu_custom_call.1} parent=5 // pred_fallthru
        _
      %p211 = scmp.le.s32.totalorder 1, %s18
      %p212 = scmp.lt.s32.totalorder %s18, 3
      %p213 = pnand %p211, %p212
      %p214 = pneg %p213
      // Predicated region
      $region29: #{tpu_custom_call.1} parent=5 // pred_check
        _
      $region30: #{tpu_custom_call.1} parent=5 // pred_check_branch
        %216 = sbr.rel (%p213) target = $region32
      $region31: #{tpu_custom_call.1} parent=5 // pred_region
        %s217 = ssub.s32 %s18, 1
        %s218 = sand.u32 %s54, 1
        %s219 = scalar_lea.sflag [#allocation3], %s218
        %s220 = sand.u32 %s54, 1
        %s221 = smul.addr %s220, 32
        %s222 = scalar_lea.vmem [#allocation2], %s221
        // Predicated region
        $region33: #{tpu_custom_call.1} parent=31 // pred_check
          %p223 = pneg %p67
        $region34: #{tpu_custom_call.1} parent=31 // pred_check_branch
          %225 = sbr.rel (%p223) target = $region36
        $region35: #{tpu_custom_call.1} parent=31 // pred_region
          %226 = dma.done %s219, 512
        $region36: #{tpu_custom_call.1} parent=31 // pred_fallthru
          _
        %s227 = sand.u32 %s84, 1
        %s228 = scalar_lea.sflag [#allocation6], %s227
        %s229 = sand.u32 %s84, 1
        %s230 = smul.addr %s229, 8
        %s231 = scalar_lea.vmem [#allocation5], %s230
        // Predicated region
        $region37: #{tpu_custom_call.1} parent=31 // pred_check
          %p232 = pneg %p97
        $region38: #{tpu_custom_call.1} parent=31 // pred_check_branch
          %234 = sbr.rel (%p232) target = $region40
        $region39: #{tpu_custom_call.1} parent=31 // pred_region
          %235 = dma.done %s228, 128
        $region40: #{tpu_custom_call.1} parent=31 // pred_fallthru
          _
        %s236 = sand.u32 %s54, 1
        %s237 = scalar_lea.sflag [#allocation3], %s236
        %s238 = sand.u32 %s54, 1
        %s239 = smul.addr %s238, 32
        %s240 = scalar_lea.vmem [#allocation2], %s239
        %p241 = pneg %p67
        %p242 = pneg %p64
        %s243 = sand.u32 %s84, 1
        %s244 = scalar_lea.sflag [#allocation6], %s243
        %s245 = sand.u32 %s84, 1
        %s246 = smul.addr %s245, 8
        %s247 = scalar_lea.vmem [#allocation5], %s246
        %p248 = pneg %p97
        %p249 = pneg %p94
        %p250 = pneg %p118
        %p251 = pneg %p115
        %p252 = pneg %p146
        %p253 = pneg %p143
        %s254 = sand.u32 %s133, 1
        %s255 = scalar_lea.sflag [#allocation4], %s254
        %s256 = sand.u32 %s133, 1
        %s257 = smul.addr %s256, 8
        %s258 = scalar_lea.vmem [#allocation7], %s257
        %s259 = sadd.s32 %s29, %s30
        %s260 = sadd.s32 %s29, %s30
        %p261 = scmp.eq.s32.totalorder %s30, 0
        // Predicated region
        $region41: #{tpu_custom_call.1} parent=31 // pred_check
          %p262 = pneg %p261
        $region42: #{tpu_custom_call.1} parent=31 // pred_check_branch
          %264 = sbr.rel (%p262) target = $region44
        $region43: #{tpu_custom_call.1} parent=31 // pred_region
          %265 = vst [vmem:[%s258] sm:$0xff] 0.0
        $region44: #{tpu_custom_call.1} parent=31 // pred_fallthru
          _
        %v266 = vld [vmem:[%s222] sm:$0xff]
        %v267 = vld [vmem:[%s222 + $0x8] sm:$0xff]
        %v268 = vld [vmem:[%s222 + $0x10] sm:$0xff]
        %v269 = vld [vmem:[%s222 + $0x18] sm:$0xff]
        %v270 = vld [vmem:[%s231] sm:$0xff]
        %v271 = vld [vmem:[%s2] sm:$0xf]
        %v272 = vmax.f32 %v266, %v267
        %v273 = vmax.f32 %v272, %v268
        %v274 = vmax.f32 %v273, %v269
        %v275 = vsub.f32 %v266, %v274
        %v276 = vmul.f32 %v275, 1.442695
        %v277 = vpow.pop %v276
        %v278 = vadd.f32 %v277, 0.0
        %vm279 = vcmp.eq.s32.totalorder %v270, 0
        %v280 = vsel %vm279, %v275, 0.0
        %v281 = vlaneseq
        %v282 = vshrl.u32 %v281, 7
        %v283 = vsub.s32 0, %v282
        %v284 = vrot.slane %v271, %v283
        %v285 = vsel %vm279, %v284, 0.0
        %v286 = vsub.f32 %v267, %v274
        %v287 = vmul.f32 %v286, 1.442695
        %v288 = vpow.pop %v287
        %v289 = vadd.f32 %v278, %v288
        %vm290 = vcmp.eq.s32.totalorder %v270, 1
        %v291 = vsel %vm290, %v286, %v280
        %v292 = vlaneseq
        %v293 = vshrl.u32 %v292, 7
        %v294 = vsub.s32 1, %v293
        %v295 = vrot.slane %v271, %v294
        %v296 = vsel %vm290, %v295, %v285
        %v297 = vsub.f32 %v268, %v274
        %v298 = vmul.f32 %v297, 1.442695
        %v299 = vpow.pop %v298
        %v300 = vadd.f32 %v289, %v299
        %vm301 = vcmp.eq.s32.totalorder %v270, 2
        %v302 = vsel %vm301, %v297, %v291
        %v303 = vlaneseq
        %v304 = vshrl.u32 %v303, 7
        %v305 = vsub.s32 2, %v304
        %v306 = vrot.slane %v271, %v305
        %v307 = vsel %vm301, %v306, %v296
        %v308 = vsub.f32 %v269, %v274
        %v309 = vmul.f32 %v308, 1.442695
        %v310 = vpow.pop %v309
        %v311 = vadd.f32 %v300, %v310
        %vm312 = vcmp.eq.s32.totalorder %v270, 3
        %v313 = vsel %vm312, %v308, %v302
        %v314 = vlaneseq
        %v315 = vshrl.u32 %v314, 7
        %v316 = vsub.s32 3, %v315
        %v317 = vrot.slane %v271, %v316
        %v318 = vsel %vm312, %v317, %v307
        %v319 = vlog2.pop %v311
        %v320 = vmul.f32 %v319, 0.6931472
        %v321 = vsub.f32 %v313, %v320
        %v322 = vmul.f32 %v321, 1.442695
        %v323 = vpow.pop %v322
        %v324 = vsub.f32 1.0, %v323
        %v325 = vmul.f32 %v324, %v324
        %v326 = vsub.f32 0.0, %v325
        %v327 = vmul.f32 %v321, %v318
        %v328 = vmul.f32 %v326, %v327
        %v329 = vld [vmem:[%s258] sm:$0xff]
        %v330 = vadd.f32 %v329, %v328
        %331 = vst [vmem:[%s258] sm:$0xff] %v330
        %s332 = sand.u32 %s133, 1
        %s333 = scalar_lea.sflag [#allocation4], %s332
        %s334 = sand.u32 %s133, 1
        %s335 = smul.addr %s334, 8
        %s336 = scalar_lea.vmem [#allocation7], %s335
        // Predicated region
        $region45: #{tpu_custom_call.1} parent=31 // pred_check
          %p337 = pneg %p143
        $region46: #{tpu_custom_call.1} parent=31 // pred_check_branch
          %339 = sbr.rel (%p337) target = $region48
        $region47: #{tpu_custom_call.1} parent=31 // pred_region
          %s341 = ssub.s32 128, 128
          %342 = vsyncadd %s333, %s341
          %s343 = sadd.s32 %s29, %s28
          %s344 = smul.addr %s343, 128
          %s345 = scalar_lea.hbm %s3, %s344
          %s347 = sshll.u32 %s336, 4
          %s348 = int_to_ptr.vmem [resolvable:$true] %s347
          %350 = dma.vmem_to_hbm [thread:$0]  %s348, 128, %s345, %s333
        $region48: #{tpu_custom_call.1} parent=31 // pred_fallthru
          _
      $region32: #{tpu_custom_call.1} parent=5 // pred_fallthru
        _
      %p351 = scmp.le.s32.totalorder 2, %s18
      // Predicated region
      $region49: #{tpu_custom_call.1} parent=5 // pred_check
        %p352 = pneg %p351
      $region50: #{tpu_custom_call.1} parent=5 // pred_check_branch
        %354 = sbr.rel (%p352) target = $region52
      $region51: #{tpu_custom_call.1} parent=5 // pred_region
        %s355 = ssub.s32 %s18, 2
        // Predicated region
        $region53: #{tpu_custom_call.1} parent=51 // pred_check
          %p356 = pneg %p149
        $region54: #{tpu_custom_call.1} parent=51 // pred_check_branch
          %358 = sbr.rel (%p356) target = $region56
        $region55: #{tpu_custom_call.1} parent=51 // pred_region
          %s359 = sand.u32 %s134, 1
          %s360 = scalar_lea.sflag [#allocation4], %s359
          %s361 = sand.u32 %s134, 1
          %s362 = smul.addr %s361, 8
          %s363 = scalar_lea.vmem [#allocation7], %s362
          %364 = dma.done %s360, 128
        $region56: #{tpu_custom_call.1} parent=51 // pred_fallthru
          _
      $region52: #{tpu_custom_call.1} parent=5 // pred_fallthru
        _
    $region6: #{tpu_custom_call.1} parent=1 // loop_footer
      %s22 = sadd.s32 1, %s18
    $region7: #{tpu_custom_call.1} parent=1 // loop_footer_branch
      %17 = sbr.rel target = $region3
    $region8: #{tpu_custom_call.1} parent=1 // loop_exit
      _
    %365 = vsyncpa [#allocation3], 1
    %s366 = scalar_lea.sflag [#allocation3], 1
    %367 = vsyncpa %s366, 1
    %368 = vsyncpa [#allocation6], 1
    %s369 = scalar_lea.sflag [#allocation6], 1
    %370 = vsyncpa %s369, 1
    %371 = vsyncpa [#allocation4], 1
    %s372 = scalar_lea.sflag [#allocation4], 1
    %373 = vsyncpa %s372, 1

</llo_original>
